<compile_context>
chip_gen: v6e
topology: v6e:2x2x1
jax: 0.10.0
libtpu: 0.0.40
codegen_flags: <defaults>
</compile_context>

<pallas_src>
import functools

import jax
import jax.numpy as jnp
from jax.experimental import pallas as pl
from jax.experimental.pallas import tpu as pltpu


# ----------------------------------------------------------------------------
# Kernel
# ----------------------------------------------------------------------------
def _quant_linear_kernel(x_ref, w_ref, s_ref, o_ref):
    """One (tm, tn) output tile; K is the innermost (reduction) grid axis.

    x_ref: (tm, tk) bf16   activation tile (cast once in the wrapper)
    w_ref: (tk, tn) int8   pre-transposed quantized weight tile ([K, N] layout)
    s_ref: (1, tn)  f32    per-output-channel scale row (per-tensor broadcast)
    o_ref: (tm, tn) f32    output tile, resident in VMEM across the K axis
    """
    k = pl.program_id(2)

    @pl.when(k == 0)
    def _():
        o_ref[...] = jnp.zeros_like(o_ref)

    # int8 -> bf16 is exact; bf16 x bf16 MXU path with f32 accumulation.
    o_ref[...] += jnp.dot(
        x_ref[...],
        w_ref[...].astype(jnp.bfloat16),
        preferred_element_type=jnp.float32,
    )

    # Scale factors per output column commute with the K-sum: apply once.
    @pl.when(k == pl.num_programs(2) - 1)
    def _():
        o_ref[...] = o_ref[...] * s_ref[...]


# ----------------------------------------------------------------------------
# Tiling helpers
# ----------------------------------------------------------------------------
def _round_up(v, m):
    return (v + m - 1) // m * m


def _pick_block(dim, candidates):
    """Largest candidate with <= 12.5% padding waste, else min-padding one."""
    best = None
    for c in candidates:  # candidates are sorted descending
        p = _round_up(dim, c)
        if (p - dim) * 8 <= p:
            return c
        key = (p, -c)
        if best is None or key < best[0]:
            best = (key, c)
    return best[1]


def _is_v7():
    try:
        return "v7" in jax.devices()[0].device_kind.lower()
    except Exception:  # pragma: no cover - conservative fallback
        return False


def _choose_run_tiles(M, Np, Kp, tn_base, tk_base):
    """Pick (tm, tn, tk) for this batch size M; tn/tk must divide Np/Kp."""
    tm = _pick_block(max(M, 8), (512, 256, 128, 64, 32, 16, 8))
    Mp = _round_up(M, tm)
    tn, tk = tn_base, tk_base

    # Small-M (decode) path: keep the whole bf16 activation resident in VMEM;
    # the K grid collapses to one step so x is streamed from HBM exactly once
    # and only the int8 weight streams.
    if Mp <= 256 and Mp * Kp * 2 <= (4 << 20) and Kp * tn <= (4 << 20):
        tm, tk = Mp, Kp

    # v7x shards the 'parallel' grid axes across its 2 TensorCores: make sure
    # there are at least 2 output tiles so both cores get work.
    if _is_v7() and (Mp // tm) * (Np // tn) < 2:
        if Np // tn < 2 and tn % 256 == 0:
            tn //= 2
        elif Mp // tm < 2 and tm % 16 == 0:
            tm //= 2

    return tm, tn, tk


# ----------------------------------------------------------------------------
# Jitted pallas_call wrapper (weight arrives already transposed + padded)
# ----------------------------------------------------------------------------
@functools.partial(jax.jit, static_argnames=("tm", "tn", "tk", "n_out"))
def _quantized_linear_2d(x2d, w_kn_p, s_row_p, *, tm, tn, tk, n_out):
    M, K = x2d.shape
    Kp, Np = w_kn_p.shape
    Mp = _round_up(M, tm)

    # bf16 activations: exact for the int8 weight side, MXU consumes bf16
    # anyway; halves activation DMA bytes and VMEM footprint.
    x_p = jnp.pad(x2d.astype(jnp.bfloat16), ((0, Mp - M), (0, Kp - K)))

    grid = (Mp // tm, Np // tn, Kp // tk)

    # Double-buffered VMEM footprint (x bf16, w int8, out f32, scale f32).
    vmem_bytes = 2 * (tm * tk * 2 + tk * tn * 1 + tm * tn * 4 + tn * 4)
    vmem_limit = int(min(vmem_bytes + (8 << 20), 30 << 20))

    out = pl.pallas_call(
        _quant_linear_kernel,
        out_shape=jax.ShapeDtypeStruct((Mp, Np), jnp.float32),
        grid_spec=pltpu.PrefetchScalarGridSpec(
            num_scalar_prefetch=0,
            grid=grid,
            in_specs=[
                pl.BlockSpec((tm, tk), lambda i, j, k: (i, k)),   # bf16 activations
                pl.BlockSpec((tk, tn), lambda i, j, k: (k, j)),   # int8 weight [K,N]
                pl.BlockSpec((1, tn), lambda i, j, k: (0, j)),    # f32 scale row
            ],
            out_specs=pl.BlockSpec((tm, tn), lambda i, j, k: (i, j)),
        ),
        compiler_params=pltpu.CompilerParams(
            dimension_semantics=("parallel", "parallel", "arbitrary"),
            vmem_limit_bytes=vmem_limit,
        ),
    )(x_p, w_kn_p, s_row_p)

    return out[:M, :n_out].astype(x2d.dtype)


# ----------------------------------------------------------------------------
# Module-like wrapper: weight prep hoisted to init (one time), forward is thin.
# ----------------------------------------------------------------------------
class PallasQuantizedLinear:
    """Pallas equivalent of QuantizedCpuLinear.forward (no bias)."""

    def __init__(self, w_int8, scale):
        w_int8 = jnp.asarray(w_int8, jnp.int8)
        N, K = w_int8.shape
        self.N, self.K = N, K

        # Layer-dependent block sizes (independent of the batch dim M).
        self.tn = _pick_block(N, (512, 384, 256, 128))
        self.tk = _pick_block(K, (1024, 768, 512, 384, 256, 128))
        Np = _round_up(N, self.tn)
        Kp = _round_up(K, self.tk)

        # One-time weight prep: transpose to [K, N] (MXU-preferred RHS layout,
        # no per-step in-kernel transpose) and zero-pad.  int8 stays on the
        # HBM wire (4x fewer bytes than pre-dequantized f32).
        w_kn = jnp.transpose(w_int8, (1, 0))
        self.w_kn_p = jnp.pad(w_kn, ((0, Kp - K), (0, Np - N)))

        scale_arr = jnp.asarray(scale, jnp.float32)
        if scale_arr.size == 1:
            s_row = jnp.broadcast_to(scale_arr.reshape(1, 1), (1, N))
        else:
            s_row = scale_arr.reshape(1, N)
        self.s_row_p = jnp.pad(s_row, ((0, 0), (0, Np - N)))

    def __call__(self, x):
        *lead, K = x.shape
        assert K == self.K, f"in_features mismatch: {K} vs {self.K}"
        x2d = x.reshape(-1, K)
        Kp, Np = self.w_kn_p.shape
        tm, tn, tk = _choose_run_tiles(x2d.shape[0], Np, Kp, self.tn, self.tk)
        out2d = _quantized_linear_2d(
            x2d, self.w_kn_p, self.s_row_p, tm=tm, tn=tn, tk=tk, n_out=self.N)
        return out2d.reshape(*lead, self.N)


def quantized_linear(x, w_int8, scale):
    """One-shot convenience wrapper (weight prep is NOT amortized here)."""
    return PallasQuantizedLinear(w_int8, scale)(x)


# ----------------------------------------------------------------------------
# Self-test
# ----------------------------------------------------------------------------
def _rel_err(out, ref):
    return float(jnp.max(jnp.abs(out - ref)) / (jnp.max(jnp.abs(ref)) + 1e-12))


if __name__ == "__main__":
    key = jax.random.PRNGKey(0)
    k_x, k_w, k_s, k_x2, k_w2, k_s2 = jax.random.split(key, 6)

    # Small shapes consistent with a Linear layer: batch=2, seq=8, K=256 -> N=128.
    batch, seq = 2, 8
    in_features, out_features = 256, 128

    x = jax.random.normal(k_x, (batch, seq, in_features), dtype=jnp.float32)
    w_int8 = jax.random.randint(k_w, (out_features, in_features), -128, 128,
                                dtype=jnp.int32).astype(jnp.int8)

    # bf16 activation path: weights/scales are exact, only the activation loses
    # mantissa bits -> use a scale-relative error metric.
    REL_TOL = 1e-2

    # --- Per-tensor symmetric (default in the module) ---
    scale_pt = jnp.array([0.05], dtype=jnp.float32)
    layer_pt = PallasQuantizedLinear(w_int8, scale_pt)
    out_pt = layer_pt(x)
    jax.block_until_ready(out_pt)
    ref_pt = x @ (w_int8.astype(jnp.float32) * scale_pt[0]).T
    assert _rel_err(out_pt, ref_pt) < REL_TOL, _rel_err(out_pt, ref_pt)

    # --- Per-channel symmetric (axis=0), scale shape [out_features, 1] ---
    scale_pc = (jax.random.uniform(k_s, (out_features, 1), dtype=jnp.float32)
                * 0.1 + 0.01)
    layer_pc = PallasQuantizedLinear(w_int8, scale_pc)
    out_pc = layer_pc(x)
    jax.block_until_ready(out_pc)
    ref_pc = x @ (w_int8.astype(jnp.float32) * scale_pc).T
    assert _rel_err(out_pc, ref_pc) < REL_TOL, _rel_err(out_pc, ref_pc)

    # --- Ragged shapes to exercise the padding path (M=10, K=200, N=96) ---
    xr = jax.random.normal(k_x2, (2, 5, 200), dtype=jnp.float32)
    wr = jax.random.randint(k_w2, (96, 200), -128, 128,
                            dtype=jnp.int32).astype(jnp.int8)
    sr = (jax.random.uniform(k_s2, (96, 1), dtype=jnp.float32) * 0.1 + 0.01)
    out_r = quantized_linear(xr, wr, sr)
    jax.block_until_ready(out_r)
    ref_r = xr @ (wr.astype(jnp.float32) * sr).T
    assert _rel_err(out_r, ref_r) < REL_TOL, _rel_err(out_r, ref_r)

    print("KERNEL_OK")
</pallas_src>

<mosaic_0001>
module attributes {stable_mosaic.version = 11 : i64} {
  func.func @_quant_linear_kernel(%arg0: i32, %arg1: i32, %arg2: i32, %arg3: memref<16x256xbf16, #tpu.memory_space<vmem>>, %arg4: memref<256x128xi8, #tpu.memory_space<vmem>>, %arg5: memref<1x128xf32, #tpu.memory_space<vmem>>, %arg6: memref<16x128xf32, #tpu.memory_space<vmem>>) attributes {dimension_semantics = [#tpu.dimension_semantics<parallel>, #tpu.dimension_semantics<parallel>, #tpu.dimension_semantics<arbitrary>], iteration_bounds = array<i64: 1, 1, 1>, scalar_prefetch = 0 : i64, scratch_operands = 0 : i64, tpu.core_type = #tpu.core_type<tc>, window_params = [{transform_indices = @transform_0, window_bounds = array<i64: 16, 256>}, {transform_indices = @transform_1, window_bounds = array<i64: 256, 128>}, {transform_indices = @transform_2, window_bounds = array<i64: 1, 128>}, {transform_indices = @transform_3, window_bounds = array<i64: 16, 128>}]} {
    %c0_i32 = arith.constant 0 : i32
    %0 = arith.cmpi eq, %arg2, %c0_i32 : i32
    %1 = arith.extui %0 : i1 to i32
    %c0_i32_0 = arith.constant 0 : i32
    %2 = arith.cmpi ne, %1, %c0_i32_0 : i32
    scf.if %2 {
      %cst_10 = arith.constant 0.000000e+00 : f32
      %13 = vector.broadcast %cst_10 : f32 to vector<16x128xf32>
      %c0_11 = arith.constant 0 : index
      %c0_12 = arith.constant 0 : index
      %14 = vector.load %arg6[%c0_11, %c0_12] : memref<16x128xf32, #tpu.memory_space<vmem>>, vector<16x128xf32>
      tpu.vector_store %arg6[%c0_11, %c0_12], %13 {strides = array<i32>} : memref<16x128xf32, #tpu.memory_space<vmem>>, vector<16x128xf32>,
    } else {
    }
    %c0 = arith.constant 0 : index
    %c0_1 = arith.constant 0 : index
    %3 = vector.load %arg6[%c0, %c0_1] : memref<16x128xf32, #tpu.memory_space<vmem>>, vector<16x128xf32>
    %c0_2 = arith.constant 0 : index
    %c0_3 = arith.constant 0 : index
    %4 = vector.load %arg3[%c0_2, %c0_3] : memref<16x256xbf16, #tpu.memory_space<vmem>>, vector<16x256xbf16>
    %c0_4 = arith.constant 0 : index
    %c0_5 = arith.constant 0 : index
    %5 = vector.load %arg4[%c0_4, %c0_5] : memref<256x128xi8, #tpu.memory_space<vmem>>, vector<256x128xi8>
    %6 = arith.sitofp %5 : vector<256x128xi8> to vector<256x128xbf16>
    %cst = arith.constant dense<0.000000e+00> : vector<16x128xf32>
    %7 = tpu.matmul %4, %6, %cst {dimension_numbers = #tpu.dot_dimension_numbers<[1], [0], [0], [1], [0, 0, 1, 1], [], []>} : vector<16x256xbf16>, vector<256x128xbf16>, vector<16x128xf32> -> vector<16x128xf32>
    %8 = arith.addf %3, %7 : vector<16x128xf32>
    %c0_6 = arith.constant 0 : index
    %c0_7 = arith.constant 0 : index
    %9 = vector.load %arg6[%c0_6, %c0_7] : memref<16x128xf32, #tpu.memory_space<vmem>>, vector<16x128xf32>
    tpu.vector_store %arg6[%c0_6, %c0_7], %8 {strides = array<i32>} : memref<16x128xf32, #tpu.memory_space<vmem>>, vector<16x128xf32>,
    %c0_i32_8 = arith.constant 0 : i32
    %10 = arith.cmpi eq, %arg2, %c0_i32_8 : i32
    %11 = arith.extui %10 : i1 to i32
    %c0_i32_9 = arith.constant 0 : i32
    %12 = arith.cmpi ne, %11, %c0_i32_9 : i32
    scf.if %12 {
      %c0_10 = arith.constant 0 : index
      %c0_11 = arith.constant 0 : index
      %13 = vector.load %arg6[%c0_10, %c0_11] : memref<16x128xf32, #tpu.memory_space<vmem>>, vector<16x128xf32>
      %c0_12 = arith.constant 0 : index
      %c0_13 = arith.constant 0 : index
      %14 = vector.load %arg5[%c0_12, %c0_13] : memref<1x128xf32, #tpu.memory_space<vmem>>, vector<1x128xf32>
      %15 = vector.broadcast %14 : vector<1x128xf32> to vector<16x128xf32>
      %16 = arith.mulf %13, %15 : vector<16x128xf32>
      %c0_14 = arith.constant 0 : index
      %c0_15 = arith.constant 0 : index
      %17 = vector.load %arg6[%c0_14, %c0_15] : memref<16x128xf32, #tpu.memory_space<vmem>>, vector<16x128xf32>
      tpu.vector_store %arg6[%c0_14, %c0_15], %16 {strides = array<i32>} : memref<16x128xf32, #tpu.memory_space<vmem>>, vector<16x128xf32>,
    } else {
    }
    return
  }
  func.func @transform_0(%arg0: i32, %arg1: i32, %arg2: i32) -> (i32, i32) {
    %c0_i32 = arith.constant 0 : i32
    return %arg0, %arg2 : i32, i32
  }
  func.func @transform_1(%arg0: i32, %arg1: i32, %arg2: i32) -> (i32, i32) {
    %c0_i32 = arith.constant 0 : i32
    return %arg2, %arg1 : i32, i32
  }
  func.func @transform_2(%arg0: i32, %arg1: i32, %arg2: i32) -> (i32, i32) {
    %c0_i32 = arith.constant 0 : i32
    %c0_i32_0 = arith.constant 0 : i32
    return %c0_i32, %arg1 : i32, i32
  }
  func.func @transform_3(%arg0: i32, %arg1: i32, %arg2: i32) -> (i32, i32) {
    %c0_i32 = arith.constant 0 : i32
    return %arg0, %arg1 : i32, i32
  }
}

</mosaic_0001>

<llo_original>
// kernel: _quantized_linear_2d.1
$region0: #{_quantized_linear_2d.1}
  #allocation0 [shape = 'u32[]', space=smem, size = 0x4, offset = 0x4, fixed_abs, tag = 'smem constant byte address 0x4 - core index']
  #allocation1 [shape = 'u32[144,128]{1,0:T(1,128)}', space=vmem, size = 0x12000, scoped, tag = 'internal scratch']
  %s0 = inlined_call_operand.vmem [shape: bf16[16,256], index: 0, kind: input, shape index: {}]
  %s1 = inlined_call_operand.hbm [shape: s8[256,128], index: 1, kind: input, shape index: {}]
  %s2 = inlined_call_operand.vmem [shape: f32[1,128], index: 2, kind: input, shape index: {}]
  %s3 = inlined_call_operand.hbm [shape: f32[16,128], index: 3, kind: output, shape index: {}]
  %s4 = sld [smem:[#allocation0]]
  $region34: #{_quantized_linear_2d.1} parent=0
    _
  %s6 = ssub.s32 1, %s4
  %s7 = scalar_select 0, %s6, %s4
  $region1: #{_quantized_linear_2d.1} parent=0
    #allocation2 [shape = 'u8[32768]{0}', space=vmem, size = 0x8000, scoped, tag = 'input window, operand 1, single buffered']
    #allocation3 [shape = 's32[1]{0}', space=sflag, size = 0x4, scoped, tag = 'scoped memory for _quantized_linear_2d.1']
    #allocation4 [shape = 's32[1]{0}', space=sflag, size = 0x4, scoped, tag = 'scoped memory for _quantized_linear_2d.1']
    #allocation5 [shape = 'u8[8192]{0}', space=vmem, size = 0x2000, scoped, tag = 'output window, operand 0, single buffered']
    %8 = vsyncpa [#allocation3], 0
    %9 = vsyncpa [#allocation4], 0
    // Predicated region
    $region2: #{_quantized_linear_2d.1} parent=1 // pred_check
      _
    $region3: #{_quantized_linear_2d.1} parent=1 // pred_check_branch
      %11 = sbr.rel (0) target = $region5
    $region4: #{_quantized_linear_2d.1} parent=1 // pred_region
      _
    $region5: #{_quantized_linear_2d.1} parent=1 // pred_fallthru
      _
    // Predicated region
    $region6: #{_quantized_linear_2d.1} parent=1 // pred_check
      _
    $region7: #{_quantized_linear_2d.1} parent=1 // pred_check_branch
      %13 = sbr.rel (0) target = $region9
    $region8: #{_quantized_linear_2d.1} parent=1 // pred_region
      %s15 = ssub.s32 1024, 1024
      %16 = vsyncadd [#allocation3], %s15
      %s17 = sshll.u32 [#allocation2], 4
      %s18 = int_to_ptr.vmem [resolvable:$true] %s17
      %23 = dma.hbm_to_vmem [thread:$0]  %s1, 1024, %s18, [#allocation3], 128, 128, 8
    $region9: #{_quantized_linear_2d.1} parent=1 // pred_fallthru
      _
    // Predicated region
    $region10: #{_quantized_linear_2d.1} parent=1 // pred_check
      _
    $region11: #{_quantized_linear_2d.1} parent=1 // pred_check_branch
      %25 = sbr.rel (0) target = $region13
    $region12: #{_quantized_linear_2d.1} parent=1 // pred_region
      _
    $region13: #{_quantized_linear_2d.1} parent=1 // pred_fallthru
      _
    // Predicated region
    $region14: #{_quantized_linear_2d.1} parent=1 // pred_check
      _
    $region15: #{_quantized_linear_2d.1} parent=1 // pred_check_branch
      %27 = sbr.rel (0) target = $region17
    $region16: #{_quantized_linear_2d.1} parent=1 // pred_region
      %28 = dma.done [#allocation3], 1024
    $region17: #{_quantized_linear_2d.1} parent=1 // pred_fallthru
      _
    %p30 = scmp.eq.s32.totalorder 0, 0
    // Predicated region
    $region18: #{_quantized_linear_2d.1} parent=1 // pred_check
      %p31 = pneg %p30
    $region19: #{_quantized_linear_2d.1} parent=1 // pred_check_branch
      %33 = sbr.rel (%p31) target = $region21
    $region20: #{_quantized_linear_2d.1} parent=1 // pred_region
      %34 = vst [vmem:[#allocation5] sm:$0xff] 0.0
      %35 = vst [vmem:[#allocation5 + $0x8] sm:$0xff] 0.0
    $region21: #{_quantized_linear_2d.1} parent=1 // pred_fallthru
      _
    %v36 = vld [vmem:[#allocation5] sm:$0xff]
    %v37 = vld [vmem:[#allocation5 + $0x8] sm:$0xff]
    %v38 = vld [vmem:[%s0] sm:$0xff]
    %v39 = vld [vmem:[%s0 + $0x8] sm:$0xff]
    %v40 = vld [vmem:[#allocation2] sm:$0xff]
    %v41 = vld [vmem:[#allocation2 + $0x8] sm:$0xff]
    %v42 = vld [vmem:[#allocation2 + $0x10] sm:$0xff]
    %v43 = vld [vmem:[#allocation2 + $0x18] sm:$0xff]
    %v44 = vld [vmem:[#allocation2 + $0x20] sm:$0xff]
    %v45 = vld [vmem:[#allocation2 + $0x28] sm:$0xff]
    %v46 = vld [vmem:[#allocation2 + $0x30] sm:$0xff]
    %v47 = vld [vmem:[#allocation2 + $0x38] sm:$0xff]
    %v48 = vunpack.c.l.s8.bf16 %v40
    %v49 = vunpack.c.h.s8.bf16 %v40
    %v50 = vunpack.c.l.s8.bf16 %v41
    %v51 = vunpack.c.h.s8.bf16 %v41
    %v52 = vunpack.c.l.s8.bf16 %v42
    %v53 = vunpack.c.h.s8.bf16 %v42
    %v54 = vunpack.c.l.s8.bf16 %v43
    %v55 = vunpack.c.h.s8.bf16 %v43
    %v56 = vunpack.c.l.s8.bf16 %v44
    %v57 = vunpack.c.h.s8.bf16 %v44
    %v58 = vunpack.c.l.s8.bf16 %v45
    %v59 = vunpack.c.h.s8.bf16 %v45
    %v60 = vunpack.c.l.s8.bf16 %v46
    %v61 = vunpack.c.h.s8.bf16 %v46
    %v62 = vunpack.c.l.s8.bf16 %v47
    %v63 = vunpack.c.h.s8.bf16 %v47
    %v66 = vunpack.c.l.b16 %v38
    %v67 = vunpack.c.h.b16 %v38
    %v68 = vunpack.c.l.b16 %v39
    %v69 = vunpack.c.h.b16 %v39
    %v70 = vpack.c.b16 %v68, %v66
    %v71 = vpack.c.b16 %v69, %v67
    %74 = vmatprep.subr.bf16.mxu0 0
    %75 = vmatpush1.bf16.msra.mxu0 %v55
    %76 = vmatprep.subr.bf16.mxu0 0
    %77 = vmatpush1.bf16.msra.mxu0 %v54
    %78 = vmatprep.subr.bf16.mxu0 0
    %79 = vmatpush1.bf16.msra.mxu0 %v53
    %80 = vmatprep.subr.bf16.mxu0 0
    %81 = vmatpush1.bf16.msra.mxu0 %v52
    %82 = vmatprep.subr.bf16.mxu0 0
    %83 = vmatpush1.bf16.msra.mxu0 %v51
    %84 = vmatprep.subr.bf16.mxu0 0
    %85 = vmatpush1.bf16.msra.mxu0 %v50
    %86 = vmatprep.subr.bf16.mxu0 0
    %87 = vmatpush1.bf16.msra.mxu0 %v49
    %88 = vmatprep.subr.bf16.mxu0 0
    %89 = vmatpush1.bf16.msra.mxu0 %v48
    %90 = vmatprep.subr.bf16.mxu0 0
    %91 = vmatpush2.bf16.msra.mxu0 %v63
    %92 = vmatprep.subr.bf16.mxu0 0
    %93 = vmatpush2.bf16.msra.mxu0 %v62
    %94 = vmatprep.subr.bf16.mxu0 0
    %95 = vmatpush2.bf16.msra.mxu0 %v61
    %96 = vmatprep.subr.bf16.mxu0 0
    %97 = vmatpush2.bf16.msra.mxu0 %v60
    %98 = vmatprep.subr.bf16.mxu0 0
    %99 = vmatpush2.bf16.msra.mxu0 %v59
    %100 = vmatprep.subr.bf16.mxu0 0
    %101 = vmatpush2.bf16.msra.mxu0 %v58
    %102 = vmatprep.subr.bf16.mxu0 0
    %103 = vmatpush2.bf16.msra.mxu0 %v57
    %104 = vmatprep.subr.bf16.mxu0 0
    %105 = vmatpush2.bf16.msra.mxu0 %v56
    %106 = vmatprep.mubr.bf16.mxu0 %v71
    %107 = vmatmul.mubr.bf16.gmra.mxu0 %v70
    %v108 = vpop.f32.mrf.mxu0
    %v109 = vadd.f32 0.0, %v108
    %v110 = vpop.f32.mrf.mxu0
    %v111 = vpop.f32.mrf.mxu0
    %v112 = vadd.f32 0.0, %v111
    %v113 = vpop.f32.mrf.mxu0
    %114 = vdwg.mxu0
    %v115 = vadd.f32 %v36, %v109
    %v116 = vadd.f32 %v37, %v112
    %117 = vst [vmem:[#allocation5] sm:$0xff] %v115
    %118 = vst [vmem:[#allocation5 + $0x8] sm:$0xff] %v116
    // Predicated region
    $region22: #{_quantized_linear_2d.1} parent=1 // pred_check
      %p119 = pneg %p30
    $region23: #{_quantized_linear_2d.1} parent=1 // pred_check_branch
      %121 = sbr.rel (%p119) target = $region25
    $region24: #{_quantized_linear_2d.1} parent=1 // pred_region
      %v122 = vld [vmem:[#allocation5] sm:$0xff]
      %v123 = vld [vmem:[#allocation5 + $0x8] sm:$0xff]
      %v124 = vld [vmem:[%s2] sm:$0x1]
      %v126 = vlaneseq
      %v127 = vshrl.u32 %v126, 7
      %v128 = vsub.s32 0, %v127
      %v129 = vrot.slane %v124, %v128
      %v131 = vmul.f32 %v122, %v129
      %v132 = vmul.f32 %v123, %v129
      %133 = vst [vmem:[#allocation5] sm:$0xff] %v131
      %134 = vst [vmem:[#allocation5 + $0x8] sm:$0xff] %v132
    $region25: #{_quantized_linear_2d.1} parent=1 // pred_fallthru
      _
    // Predicated region
    $region26: #{_quantized_linear_2d.1} parent=1 // pred_check
      _
    $region27: #{_quantized_linear_2d.1} parent=1 // pred_check_branch
      %136 = sbr.rel (0) target = $region29
    $region28: #{_quantized_linear_2d.1} parent=1 // pred_region
      %s138 = ssub.s32 256, 256
      %139 = vsyncadd [#allocation4], %s138
      %s140 = sshll.u32 [#allocation5], 4
      %s141 = int_to_ptr.vmem [resolvable:$true] %s140
      %146 = dma.vmem_to_hbm [thread:$0]  %s141, 256, %s3, [#allocation4], 128, 128, 8
    $region29: #{_quantized_linear_2d.1} parent=1 // pred_fallthru
      _
    // Predicated region
    $region30: #{_quantized_linear_2d.1} parent=1 // pred_check
      _
    $region31: #{_quantized_linear_2d.1} parent=1 // pred_check_branch
      %148 = sbr.rel (0) target = $region33
    $region32: #{_quantized_linear_2d.1} parent=1 // pred_region
      %149 = dma.done [#allocation4], 256
    $region33: #{_quantized_linear_2d.1} parent=1 // pred_fallthru
      _
    %150 = vsyncpa [#allocation3], 1
    %151 = vsyncpa [#allocation4], 1

</llo_original>
